<compile_context>
chip_gen: v7x
topology: tpu7x:2x2x1
jax: 0.10.0
libtpu: 0.0.40
codegen_flags: <defaults>
</compile_context>

<pallas_src>
import jax
import jax.numpy as jnp
from jax.experimental import pallas as pl
from jax.experimental.pallas import tpu as pltpu

LAMBDA_OPA = 0.001
EPS = 1e-08
ROW_WIDTH = 512          # lane-dense slab width (multiple of 128)


def _nerf_loss_kernel(rgb_ref, rgbs_ref, opa_ref, d_rgb_ref, d_opa_ref):
    # rgb squared error (elementwise, VPU)
    diff = rgb_ref[...] - rgbs_ref[...]
    d_rgb_ref[...] = diff * diff

    # opacity entropy regularizer: lambda * (-o * log(o)); log uses the EUP slot
    o = opa_ref[...] + EPS
    d_opa_ref[...] = (-LAMBDA_OPA) * (o * jnp.log(o))


def _round_up(x, m):
    return ((x + m - 1) // m) * m


def _tile_config():
    """Returns (max_tile_rows, vmem_limit_bytes, split_single_step) per TPU gen.

    Rows are opacity-slab rows (2 KiB each); the rgb slab has 3x the rows, so
    per-step footprint is ~22 KiB/row and ~44 KiB/row double-buffered.
    """
    kind = ""
    try:
        kind = jax.devices()[0].device_kind.lower()
    except Exception:
        pass
    if "v7" in kind:
        # 640 rows -> ~27.5 MiB double-buffered, well under 64 MiB physical VMEM.
        return 640, 48 << 20, True
    if "v6" in kind or "trillium" in kind:
        # 704 rows -> ~30 MiB double-buffered (128 MiB physical VMEM).
        return 704, 48 << 20, False
    if "v5" in kind:
        # 256 rows -> ~11 MiB double-buffered, fits the 16 MiB default scoped VMEM.
        return 256, None, False
    return 256, None, False   # conservative default for unknown chips


def _pallas_main(rgb_main, rgbs_main, opa_main, n_main):
    """Runs the fused kernel on a 512-ray-aligned prefix (n_main % 512 == 0)."""
    rows_opa = n_main // ROW_WIDTH
    rows_rgb = 3 * rows_opa

    max_rows, vmem_limit, split_two = _tile_config()

    if rows_opa > max_rows:
        tile_rows = max_rows                              # ragged last block OK
    elif split_two and rows_opa >= 16:
        # Split a single-step problem across v7x's two TensorCores.
        tile_rows = _round_up(pl.cdiv(rows_opa, 2), 8)
    else:
        tile_rows = rows_opa                              # block == full array

    grid_n = pl.cdiv(rows_opa, tile_rows)                 # no padding to tile multiple

    # Pure reshapes of contiguous data (bitcast-level when N is 512-aligned).
    rgb_slab = rgb_main.reshape(rows_rgb, ROW_WIDTH)
    rgbs_slab = rgbs_main.reshape(rows_rgb, ROW_WIDTH)
    opa_slab = opa_main.reshape(rows_opa, ROW_WIDTH)

    rgb_tile = (3 * tile_rows, ROW_WIDTH)
    opa_tile = (tile_rows, ROW_WIDTH)

    d_rgb_slab, d_opa_slab = pl.pallas_call(
        _nerf_loss_kernel,
        out_shape=(
            jax.ShapeDtypeStruct((rows_rgb, ROW_WIDTH), rgb_main.dtype),
            jax.ShapeDtypeStruct((rows_opa, ROW_WIDTH), opa_main.dtype),
        ),
        grid_spec=pl.GridSpec(
            grid=(grid_n,),
            in_specs=[
                pl.BlockSpec(rgb_tile, lambda i: (i, 0)),
                pl.BlockSpec(rgb_tile, lambda i: (i, 0)),
                pl.BlockSpec(opa_tile, lambda i: (i, 0)),
            ],
            out_specs=[
                pl.BlockSpec(rgb_tile, lambda i: (i, 0)),
                pl.BlockSpec(opa_tile, lambda i: (i, 0)),
            ],
        ),
        compiler_params=pltpu.CompilerParams(
            dimension_semantics=("parallel",),
            vmem_limit_bytes=vmem_limit,
        ),
        cost_estimate=pl.CostEstimate(
            flops=8 * n_main,
            transcendentals=n_main,
            bytes_accessed=44 * n_main,   # 7 f32 in-streams + 4 f32 out per ray
        ),
    )(rgb_slab, rgbs_slab, opa_slab)

    return d_rgb_slab.reshape(n_main, 3), d_opa_slab.reshape(n_main, 1)


def _jnp_tail(rgb_t, rgbs_t, opa_t):
    d_rgb = (rgb_t - rgbs_t) ** 2
    o = opa_t + EPS
    d_opa = LAMBDA_OPA * (-o * jnp.log(o))
    return d_rgb, d_opa


@jax.jit
def nerf_loss(results_rgb, rgbs, results_opacity):
    """results_rgb, rgbs: (N, 3); results_opacity: (N, 1).

    Returns {'rgb': (N, 3), 'opacity': (N, 1)} per-element losses, matching
    the PyTorch NeRFLoss.forward output (no reduction).
    """
    n_rays, n_ch = results_rgb.shape
    assert n_ch == 3
    assert rgbs.shape == (n_rays, 3)
    assert results_opacity.shape == (n_rays, 1)

    if n_rays == 0:
        return {"rgb": jnp.zeros((0, 3), results_rgb.dtype),
                "opacity": jnp.zeros((0, 1), results_opacity.dtype)}

    n_main = (n_rays // ROW_WIDTH) * ROW_WIDTH
    n_tail = n_rays - n_main

    parts_rgb, parts_opa = [], []
    if n_main > 0:
        d_rgb_main, d_opa_main = _pallas_main(
            results_rgb if n_tail == 0 else results_rgb[:n_main],
            rgbs if n_tail == 0 else rgbs[:n_main],
            results_opacity if n_tail == 0 else results_opacity[:n_main],
            n_main,
        )
        parts_rgb.append(d_rgb_main)
        parts_opa.append(d_opa_main)
    if n_tail > 0:
        # <512-ray ragged tail: plain jnp (fixed-overhead bound, not worth a DMA).
        d_rgb_t, d_opa_t = _jnp_tail(results_rgb[n_main:], rgbs[n_main:],
                                     results_opacity[n_main:])
        parts_rgb.append(d_rgb_t)
        parts_opa.append(d_opa_t)

    if len(parts_rgb) == 1:
        d_rgb, d_opa = parts_rgb[0], parts_opa[0]
    else:
        d_rgb = jnp.concatenate(parts_rgb, axis=0)
        d_opa = jnp.concatenate(parts_opa, axis=0)
    return {"rgb": d_rgb, "opacity": d_opa}


if __name__ == "__main__":
    key = jax.random.PRNGKey(0)
    k1, k2, k3 = jax.random.split(key, 3)

    # Small NeRF batch, 512-aligned -> zero-copy Pallas path.
    n_rays = 4096
    results_rgb = jax.random.uniform(k1, (n_rays, 3), dtype=jnp.float32)
    rgbs = jax.random.uniform(k2, (n_rays, 3), dtype=jnp.float32)
    results_opacity = jax.random.uniform(k3, (n_rays, 1), dtype=jnp.float32)

    out = nerf_loss(results_rgb, rgbs, results_opacity)
    jax.block_until_ready(out)

    ref_rgb = (results_rgb - rgbs) ** 2
    o = results_opacity + EPS
    ref_opa = LAMBDA_OPA * (-o * jnp.log(o))

    assert out["rgb"].shape == (n_rays, 3)
    assert out["opacity"].shape == (n_rays, 1)
    assert jnp.allclose(out["rgb"], ref_rgb, atol=1e-6, rtol=1e-6)
    assert jnp.allclose(out["opacity"], ref_opa, atol=1e-6, rtol=1e-6)

    # Unaligned size: Pallas on the 4096-ray prefix + 77-ray jnp tail.
    n2 = 4096 + 77
    r2 = jax.random.uniform(k1, (n2, 3), dtype=jnp.float32)
    g2 = jax.random.uniform(k2, (n2, 3), dtype=jnp.float32)
    op2 = jax.random.uniform(k3, (n2, 1), dtype=jnp.float32)
    out2 = nerf_loss(r2, g2, op2)
    jax.block_until_ready(out2)
    oo = op2 + EPS
    assert jnp.allclose(out2["rgb"], (r2 - g2) ** 2, atol=1e-6, rtol=1e-6)
    assert jnp.allclose(out2["opacity"], LAMBDA_OPA * (-oo * jnp.log(oo)),
                        atol=1e-6, rtol=1e-6)

    print("KERNEL_OK")
</pallas_src>

<mosaic_0001>
module attributes {stable_mosaic.version = 11 : i64} {
  func.func @_nerf_loss_kernel(%arg0: i32, %arg1: memref<24x512xf32, #tpu.memory_space<vmem>>, %arg2: memref<24x512xf32, #tpu.memory_space<vmem>>, %arg3: memref<8x512xf32, #tpu.memory_space<vmem>>, %arg4: memref<24x512xf32, #tpu.memory_space<vmem>>, %arg5: memref<8x512xf32, #tpu.memory_space<vmem>>) attributes {dimension_semantics = [#tpu.dimension_semantics<parallel>], iteration_bounds = array<i64: 1>, scalar_prefetch = 0 : i64, scratch_operands = 0 : i64, tpu.core_type = #tpu.core_type<tc>, window_params = [{transform_indices = @transform_0, window_bounds = array<i64: 24, 512>}, {transform_indices = @transform_1, window_bounds = array<i64: 24, 512>}, {transform_indices = @transform_2, window_bounds = array<i64: 8, 512>}, {transform_indices = @transform_3, window_bounds = array<i64: 24, 512>}, {transform_indices = @transform_4, window_bounds = array<i64: 8, 512>}]} {
    %c0 = arith.constant 0 : index
    %c0_0 = arith.constant 0 : index
    %0 = vector.load %arg1[%c0, %c0_0] : memref<24x512xf32, #tpu.memory_space<vmem>>, vector<24x512xf32>
    %c0_1 = arith.constant 0 : index
    %c0_2 = arith.constant 0 : index
    %1 = vector.load %arg2[%c0_1, %c0_2] : memref<24x512xf32, #tpu.memory_space<vmem>>, vector<24x512xf32>
    %2 = arith.subf %0, %1 : vector<24x512xf32>
    %3 = arith.mulf %2, %2 : vector<24x512xf32>
    %c0_3 = arith.constant 0 : index
    %c0_4 = arith.constant 0 : index
    %4 = vector.load %arg4[%c0_3, %c0_4] : memref<24x512xf32, #tpu.memory_space<vmem>>, vector<24x512xf32>
    tpu.vector_store %arg4[%c0_3, %c0_4], %3 {strides = array<i32>} : memref<24x512xf32, #tpu.memory_space<vmem>>, vector<24x512xf32>,
    %c0_5 = arith.constant 0 : index
    %c0_6 = arith.constant 0 : index
    %5 = vector.load %arg3[%c0_5, %c0_6] : memref<8x512xf32, #tpu.memory_space<vmem>>, vector<8x512xf32>
    %cst = arith.constant 9.99999993E-9 : f32
    %6 = vector.broadcast %cst : f32 to vector<8x512xf32>
    %7 = arith.addf %5, %6 : vector<8x512xf32>
    %8 = math.log %7 : vector<8x512xf32>
    %9 = arith.mulf %7, %8 : vector<8x512xf32>
    %cst_7 = arith.constant -1.000000e-03 : f32
    %10 = vector.broadcast %cst_7 : f32 to vector<8x512xf32>
    %11 = arith.mulf %10, %9 : vector<8x512xf32>
    %c0_8 = arith.constant 0 : index
    %c0_9 = arith.constant 0 : index
    %12 = vector.load %arg5[%c0_8, %c0_9] : memref<8x512xf32, #tpu.memory_space<vmem>>, vector<8x512xf32>
    tpu.vector_store %arg5[%c0_8, %c0_9], %11 {strides = array<i32>} : memref<8x512xf32, #tpu.memory_space<vmem>>, vector<8x512xf32>,
    return
  }
  func.func @transform_0(%arg0: i32) -> (i32, i32) {
    %c0_i32 = arith.constant 0 : i32
    %c0_i32_0 = arith.constant 0 : i32
    return %arg0, %c0_i32 : i32, i32
  }
  func.func @transform_1(%arg0: i32) -> (i32, i32) {
    %c0_i32 = arith.constant 0 : i32
    %c0_i32_0 = arith.constant 0 : i32
    return %arg0, %c0_i32 : i32, i32
  }
  func.func @transform_2(%arg0: i32) -> (i32, i32) {
    %c0_i32 = arith.constant 0 : i32
    %c0_i32_0 = arith.constant 0 : i32
    return %arg0, %c0_i32 : i32, i32
  }
  func.func @transform_3(%arg0: i32) -> (i32, i32) {
    %c0_i32 = arith.constant 0 : i32
    %c0_i32_0 = arith.constant 0 : i32
    return %arg0, %c0_i32 : i32, i32
  }
  func.func @transform_4(%arg0: i32) -> (i32, i32) {
    %c0_i32 = arith.constant 0 : i32
    %c0_i32_0 = arith.constant 0 : i32
    return %arg0, %c0_i32 : i32, i32
  }
}

</mosaic_0001>

<llo_original>
// kernel: nerf_loss.1
$region0: #{nerf_loss.1}
  #allocation0 [shape = 'u32[]', space=smem, size = 0x4, offset = 0x4, fixed_abs, tag = 'smem constant byte address 0x4 - core index']
  #allocation1 [shape = 'u32[144,128]{1,0:T(1,128)}', space=vmem, size = 0x12000, scoped, tag = 'internal scratch']
  %s0 = inlined_call_operand.vmem [shape: f32[24,512], index: 0, kind: input, shape index: {}]
  %s1 = inlined_call_operand.vmem [shape: f32[24,512], index: 1, kind: input, shape index: {}]
  %s2 = inlined_call_operand.vmem [shape: f32[8,512], index: 2, kind: input, shape index: {}]
  %s3 = inlined_call_operand.vmem [shape: f32[24,512], index: 3, kind: output, shape index: {0}]
  %s4 = inlined_call_operand.vmem [shape: f32[8,512], index: 4, kind: output, shape index: {1}]
  %5 = xla_tuple %s3, %s4
  %s6 = sld [smem:[#allocation0]]
  $region30: #{nerf_loss.1} parent=0
    _
  %s8 = ssub.s32 1, %s6
  %s9 = scalar_select 0, %s8, %s6
  // Predicated region
  $region2: #{nerf_loss.1} parent=0 // pred_check
    _
  $region3: #{nerf_loss.1} parent=0 // pred_check_branch
    %11 = sbr.rel (0) target = $region5
  $region4: #{nerf_loss.1} parent=0 // pred_region
    _
  $region5: #{nerf_loss.1} parent=0 // pred_fallthru
    _
  // Predicated region
  $region6: #{nerf_loss.1} parent=0 // pred_check
    _
  $region7: #{nerf_loss.1} parent=0 // pred_check_branch
    %13 = sbr.rel (0) target = $region9
  $region8: #{nerf_loss.1} parent=0 // pred_region
    _
  $region9: #{nerf_loss.1} parent=0 // pred_fallthru
    _
  // Predicated region
  $region10: #{nerf_loss.1} parent=0 // pred_check
    _
  $region11: #{nerf_loss.1} parent=0 // pred_check_branch
    %15 = sbr.rel (0) target = $region13
  $region12: #{nerf_loss.1} parent=0 // pred_region
    _
  $region13: #{nerf_loss.1} parent=0 // pred_fallthru
    _
  %v16 = vld [vmem:[%s0] sm:$0xff]
  %v17 = vld [vmem:[%s0 + $0x8] sm:$0xff]
  %v18 = vld [vmem:[%s0 + $0x10] sm:$0xff]
  %v19 = vld [vmem:[%s0 + $0x18] sm:$0xff]
  %v20 = vld [vmem:[%s0 + $0x20] sm:$0xff]
  %v21 = vld [vmem:[%s0 + $0x28] sm:$0xff]
  %v22 = vld [vmem:[%s0 + $0x30] sm:$0xff]
  %v23 = vld [vmem:[%s0 + $0x38] sm:$0xff]
  %v24 = vld [vmem:[%s0 + $0x40] sm:$0xff]
  %v25 = vld [vmem:[%s0 + $0x48] sm:$0xff]
  %v26 = vld [vmem:[%s0 + $0x50] sm:$0xff]
  %v27 = vld [vmem:[%s0 + $0x58] sm:$0xff]
  %v28 = vld [vmem:[%s1] sm:$0xff]
  %v29 = vld [vmem:[%s1 + $0x8] sm:$0xff]
  %v30 = vld [vmem:[%s1 + $0x10] sm:$0xff]
  %v31 = vld [vmem:[%s1 + $0x18] sm:$0xff]
  %v32 = vld [vmem:[%s1 + $0x20] sm:$0xff]
  %v33 = vld [vmem:[%s1 + $0x28] sm:$0xff]
  %v34 = vld [vmem:[%s1 + $0x30] sm:$0xff]
  %v35 = vld [vmem:[%s1 + $0x38] sm:$0xff]
  %v36 = vld [vmem:[%s1 + $0x40] sm:$0xff]
  %v37 = vld [vmem:[%s1 + $0x48] sm:$0xff]
  %v38 = vld [vmem:[%s1 + $0x50] sm:$0xff]
  %v39 = vld [vmem:[%s1 + $0x58] sm:$0xff]
  %v40 = vsub.f32 %v16, %v28
  %v41 = vsub.f32 %v17, %v29
  %v42 = vsub.f32 %v18, %v30
  %v43 = vsub.f32 %v19, %v31
  %v44 = vsub.f32 %v20, %v32
  %v45 = vsub.f32 %v21, %v33
  %v46 = vsub.f32 %v22, %v34
  %v47 = vsub.f32 %v23, %v35
  %v48 = vsub.f32 %v24, %v36
  %v49 = vsub.f32 %v25, %v37
  %v50 = vsub.f32 %v26, %v38
  %v51 = vsub.f32 %v27, %v39
  %v52 = vmul.f32 %v40, %v40
  %v53 = vmul.f32 %v41, %v41
  %v54 = vmul.f32 %v42, %v42
  %v55 = vmul.f32 %v43, %v43
  %v56 = vmul.f32 %v44, %v44
  %v57 = vmul.f32 %v45, %v45
  %v58 = vmul.f32 %v46, %v46
  %v59 = vmul.f32 %v47, %v47
  %v60 = vmul.f32 %v48, %v48
  %v61 = vmul.f32 %v49, %v49
  %v62 = vmul.f32 %v50, %v50
  %v63 = vmul.f32 %v51, %v51
  %64 = vst [vmem:[%s3] sm:$0xff] %v52
  %65 = vst [vmem:[%s3 + $0x8] sm:$0xff] %v53
  %66 = vst [vmem:[%s3 + $0x10] sm:$0xff] %v54
  %67 = vst [vmem:[%s3 + $0x18] sm:$0xff] %v55
  %68 = vst [vmem:[%s3 + $0x20] sm:$0xff] %v56
  %69 = vst [vmem:[%s3 + $0x28] sm:$0xff] %v57
  %70 = vst [vmem:[%s3 + $0x30] sm:$0xff] %v58
  %71 = vst [vmem:[%s3 + $0x38] sm:$0xff] %v59
  %72 = vst [vmem:[%s3 + $0x40] sm:$0xff] %v60
  %73 = vst [vmem:[%s3 + $0x48] sm:$0xff] %v61
  %74 = vst [vmem:[%s3 + $0x50] sm:$0xff] %v62
  %75 = vst [vmem:[%s3 + $0x58] sm:$0xff] %v63
  %v76 = vld [vmem:[%s2] sm:$0xff]
  %v77 = vld [vmem:[%s2 + $0x8] sm:$0xff]
  %v78 = vld [vmem:[%s2 + $0x10] sm:$0xff]
  %v79 = vld [vmem:[%s2 + $0x18] sm:$0xff]
  %v80 = vadd.f32 %v76, 1e-08
  %v81 = vadd.f32 %v77, 1e-08
  %v82 = vadd.f32 %v78, 1e-08
  %v83 = vadd.f32 %v79, 1e-08
  %v84 = vlog2.pop %v80
  %v85 = vmul.f32 %v84, 0.6931472
  %v86 = vlog2.pop %v81
  %v87 = vmul.f32 %v86, 0.6931472
  %v88 = vlog2.pop %v82
  %v89 = vmul.f32 %v88, 0.6931472
  %v90 = vlog2.pop %v83
  %v91 = vmul.f32 %v90, 0.6931472
  %v92 = vmul.f32 %v80, %v85
  %v93 = vmul.f32 %v81, %v87
  %v94 = vmul.f32 %v82, %v89
  %v95 = vmul.f32 %v83, %v91
  %v96 = vmul.f32 %v92, -0.001
  %v97 = vmul.f32 %v93, -0.001
  %v98 = vmul.f32 %v94, -0.001
  %v99 = vmul.f32 %v95, -0.001
  %100 = vst [vmem:[%s4] sm:$0xff] %v96
  %101 = vst [vmem:[%s4 + $0x8] sm:$0xff] %v97
  %102 = vst [vmem:[%s4 + $0x10] sm:$0xff] %v98
  %103 = vst [vmem:[%s4 + $0x18] sm:$0xff] %v99
  // Predicated region
  $region14: #{nerf_loss.1} parent=0 // pred_check
    _
  $region15: #{nerf_loss.1} parent=0 // pred_check_branch
    %105 = sbr.rel (0) target = $region17
  $region16: #{nerf_loss.1} parent=0 // pred_region
    _
  $region17: #{nerf_loss.1} parent=0 // pred_fallthru
    _
  // Predicated region
  $region18: #{nerf_loss.1} parent=0 // pred_check
    _
  $region19: #{nerf_loss.1} parent=0 // pred_check_branch
    %107 = sbr.rel (0) target = $region21
  $region20: #{nerf_loss.1} parent=0 // pred_region
    _
  $region21: #{nerf_loss.1} parent=0 // pred_fallthru
    _
  // Predicated region
  $region22: #{nerf_loss.1} parent=0 // pred_check
    _
  $region23: #{nerf_loss.1} parent=0 // pred_check_branch
    %109 = sbr.rel (0) target = $region25
  $region24: #{nerf_loss.1} parent=0 // pred_region
    _
  $region25: #{nerf_loss.1} parent=0 // pred_fallthru
    _
  // Predicated region
  $region26: #{nerf_loss.1} parent=0 // pred_check
    _
  $region27: #{nerf_loss.1} parent=0 // pred_check_branch
    %111 = sbr.rel (0) target = $region29
  $region28: #{nerf_loss.1} parent=0 // pred_region
    _
  $region29: #{nerf_loss.1} parent=0 // pred_fallthru
    _

</llo_original>
